<compile_context>
chip_gen: v7x
topology: tpu7x:2x2x1
jax: 0.10.0
libtpu: 0.0.40
codegen_flags: <defaults>
</compile_context>

<pallas_src>
import jax
import jax.numpy as jnp
from jax.experimental import pallas as pl
from jax.experimental.pallas import tpu as pltpu

HIDDEN = 128           # Linear in_features (fixed by the module)
NUM_CLASSES = 2        # Linear out_features
NUM_CORES = 2          # leading "parallel" grid axis (v7x: 2 TCs; harmless elsewhere)
LANE = 128             # lane width; batch tiles are multiples of this
DEFAULT_TILE_N = 8192  # rows per grid step (4 MiB f32 x-block)


def _round_up(a, b):
    return -(-a // b) * b


def _make_kernel(n_valid, tile_n, tiles_per_core):
    """Build the kernel with static batch/tiling parameters closed over."""

    def kernel(b_ref, w_ref, x_ref, y_ref, out_ref, acc_ref):
        # b_ref:   SMEM (1,)        f32  -> (bias[1]-bias[0]) / r
        # w_ref:   VMEM (8, 128)    f32  -> (W[1]-W[0]) / r, replicated over 8 rows
        # x_ref:   VMEM (tile, 128) f32 or bf16
        # y_ref:   VMEM (1, tile)   f32 labels (lane-dense)
        # out_ref: VMEM (1, 8, 128) f32 per-core partial-sum slab (lane-dense)
        # acc_ref: SMEM (1,)        f32 running sum for this core
        c = pl.program_id(0)   # core / partial-sum index
        i = pl.program_id(1)   # batch-tile index within this core

        @pl.when(i == 0)
        def _():
            acc_ref[0] = jnp.float32(0.0)

        x = x_ref[...].astype(jnp.float32)     # (tile, 128)
        w = w_ref[...]                         # (8, 128), identical rows
        y = y_ref[...]                         # (1, tile)

        # MXU contraction with the batch landing on lanes:
        #   s8[r, i] = sum_k w[r, k] * x[i, k]  -> (8, tile), rows identical.
        # This is the standard "A @ B^T" dot_general (same pattern as q @ k^T).
        s8 = jax.lax.dot_general(
            w, x,
            dimension_numbers=(((1,), (1,)), ((), ())),
            preferred_element_type=jnp.float32)
        s = s8[0:1, :] + b_ref[0]              # (1, tile) r-scaled logit difference

        # log p1 = -softplus(-s), log p0 = -softplus(s); nn.BCELoss clamps each
        # log term at -100.  softplus(-s) == softplus(s) - s (one exp + one log
        # total, on only tile/128 lane-dense vregs).
        sp_pos = jnp.maximum(s, 0.0) + jnp.log(1.0 + jnp.exp(-jnp.abs(s)))  # softplus(s)
        sp_neg = sp_pos - s                                                  # softplus(-s)
        nll1 = jnp.minimum(sp_neg, jnp.float32(100.0))   # -max(log p1, -100)
        nll0 = jnp.minimum(sp_pos, jnp.float32(100.0))   # -max(log p0, -100)
        per = y * nll1 + (1.0 - y) * nll0                # (1, tile)

        # Mask padded tail columns (N not a multiple of the tiling) before summing.
        blk = c * tiles_per_core + i
        col = blk * tile_n + jax.lax.broadcasted_iota(jnp.int32, per.shape, 1)
        per = jnp.where(col < n_valid, per, 0.0)

        acc_ref[0] += jnp.sum(per)

        @pl.when(i == pl.num_programs(1) - 1)
        def _():
            # Lane-dense write; only element [0, 0, 0] is consumed outside.
            out_ref[...] = acc_ref[0] + jnp.zeros((1, 8, 128), jnp.float32)

    return kernel


def lossv_forward(x, labels, weight, bias, r=1.0, tile_n=DEFAULT_TILE_N):
    """x: (N, 1, 128); labels: (N,); weight: (2, 128); bias: (2,) — PyTorch conventions."""
    x2 = jnp.squeeze(x, axis=1)                              # (N, 128)
    if x2.dtype not in (jnp.float32, jnp.bfloat16):
        x2 = x2.astype(jnp.float32)
    n = x2.shape[0]

    # Fold the temperature r and the 2-class structure into a single
    # (128,) difference vector + scalar bias (tiny wrapper-side ops).
    inv_r = jnp.float32(1.0) / jnp.float32(r)
    w_diff = ((weight[1] - weight[0]).astype(jnp.float32) * inv_r).reshape(1, HIDDEN)
    w8 = jnp.broadcast_to(w_diff, (8, HIDDEN))               # MXU-friendly lhs (8, 128)
    b_eff = ((bias[1] - bias[0]).astype(jnp.float32) * inv_r).reshape(1)

    # Tiling: tile rows are a multiple of 128 (lane width of the lane-dense
    # label / loss row); pad the batch so each of the NUM_CORES partial sums
    # gets the same number of tiles.  Padding only triggers an extra copy of x
    # when N is not already tile-aligned.
    tile = max(LANE, min(int(tile_n), _round_up(n, LANE)))
    tile = _round_up(tile, LANE)
    num_tiles = -(-n // tile)
    tiles_per_core = -(-num_tiles // NUM_CORES)
    n_pad = tiles_per_core * NUM_CORES * tile

    y = labels.astype(jnp.float32).reshape(1, n)             # lane-dense labels
    if n_pad != n:
        x2 = jnp.pad(x2, ((0, n_pad - n), (0, 0)))
        y = jnp.pad(y, ((0, 0), (0, n_pad - n)))

    kernel = _make_kernel(n, tile, tiles_per_core)

    partials = pl.pallas_call(
        kernel,
        out_shape=jax.ShapeDtypeStruct((NUM_CORES, 8, 128), jnp.float32),
        grid_spec=pltpu.PrefetchScalarGridSpec(
            num_scalar_prefetch=0,
            grid=(NUM_CORES, tiles_per_core),
            in_specs=[
                pl.BlockSpec(memory_space=pltpu.MemorySpace.SMEM),          # b_eff
                pl.BlockSpec((8, HIDDEN), lambda c, i: (0, 0)),             # w8
                pl.BlockSpec((tile, HIDDEN),
                             lambda c, i: (c * tiles_per_core + i, 0)),     # x
                pl.BlockSpec((1, tile),
                             lambda c, i: (0, c * tiles_per_core + i)),     # labels
            ],
            out_specs=pl.BlockSpec((1, 8, 128), lambda c, i: (c, 0, 0)),
            scratch_shapes=[pltpu.SMEM((1,), jnp.float32)],
        ),
        compiler_params=pltpu.CompilerParams(
            dimension_semantics=("parallel", "arbitrary")),
    )(b_eff, w8, x2, y)

    # Combine the per-core partial sums and take the mean over the true N.
    return jnp.sum(partials[:, 0, 0]) / jnp.float32(n)


def reference_forward(x, labels, weight, bias, r=1.0):
    """Plain-JAX reference mirroring the PyTorch module (for sanity check)."""
    x2 = jnp.squeeze(x, axis=1).astype(jnp.float32)
    logits = (x2 @ weight.T.astype(jnp.float32) + bias.astype(jnp.float32)) / r
    p = jax.nn.softmax(logits, axis=-1)
    p1 = p[:, 1]
    y = labels.astype(jnp.float32)
    log_p = jnp.maximum(jnp.log(p1), -100.0)
    log_1mp = jnp.maximum(jnp.log(1.0 - p1), -100.0)
    return jnp.mean(-(y * log_p + (1.0 - y) * log_1mp))


if __name__ == "__main__":
    key = jax.random.PRNGKey(0)
    k_x, k_y, k_w, k_b, k_x2, k_y2 = jax.random.split(key, 6)

    # Deterministic Linear(128, 2) init (uniform +/- 1/sqrt(fan_in), like PyTorch default).
    bound = 1.0 / jnp.sqrt(jnp.float32(HIDDEN))
    weight = jax.random.uniform(k_w, (NUM_CLASSES, HIDDEN), jnp.float32, -bound, bound)
    bias = jax.random.uniform(k_b, (NUM_CLASSES,), jnp.float32, -bound, bound)

    # Small primary case (single tile per core).
    N = 8
    x = jax.random.normal(k_x, (N, 1, HIDDEN), dtype=jnp.float32)
    labels = jax.random.bernoulli(k_y, 0.5, (N,)).astype(jnp.float32)
    loss = lossv_forward(x, labels, weight, bias, r=1.0)
    jax.block_until_ready(loss)
    ref = reference_forward(x, labels, weight, bias, r=1.0)
    assert jnp.allclose(loss, ref, atol=1e-5, rtol=1e-5), (loss, ref)

    # Ragged / multi-tile / two-partial-sum case (still small) with r != 1.
    N2 = 300
    x2 = jax.random.normal(k_x2, (N2, 1, HIDDEN), dtype=jnp.float32)
    labels2 = jax.random.bernoulli(k_y2, 0.5, (N2,)).astype(jnp.float32)
    loss2 = lossv_forward(x2, labels2, weight, bias, r=2.0, tile_n=128)
    jax.block_until_ready(loss2)
    ref2 = reference_forward(x2, labels2, weight, bias, r=2.0)
    assert jnp.allclose(loss2, ref2, atol=1e-5, rtol=1e-5), (loss2, ref2)

    print("KERNEL_OK")
</pallas_src>

<mosaic_0001>
module attributes {stable_mosaic.version = 11 : i64} {
  func.func @kernel(%arg0: i32, %arg1: i32, %arg2: memref<1xf32, #tpu.memory_space<smem>>, %arg3: memref<8x128xf32, #tpu.memory_space<vmem>>, %arg4: memref<128x128xf32, #tpu.memory_space<vmem>>, %arg5: memref<1x128xf32, #tpu.memory_space<vmem>>, %arg6: memref<1x8x128xf32, #tpu.memory_space<vmem>>, %arg7: memref<1xf32, #tpu.memory_space<smem>>) attributes {dimension_semantics = [#tpu.dimension_semantics<parallel>, #tpu.dimension_semantics<arbitrary>], iteration_bounds = array<i64: 2, 1>, scalar_prefetch = 0 : i64, scratch_operands = 1 : i64, tpu.core_type = #tpu.core_type<tc>, window_params = [{transform_indices = @transform_0, window_bounds = array<i64: 1>}, {pipeline_mode = #tpu.pipeline_mode<synchronous>, transform_indices = @transform_1, window_bounds = array<i64: 8, 128>}, {transform_indices = @transform_2, window_bounds = array<i64: 128, 128>}, {transform_indices = @transform_3, window_bounds = array<i64: 1, 128>}, {transform_indices = @transform_4, window_bounds = array<i64: 1, 8, 128>}]} {
    %c0_i32 = arith.constant 0 : i32
    %0 = arith.cmpi eq, %arg1, %c0_i32 : i32
    %1 = arith.extui %0 : i1 to i32
    %c0_i32_0 = arith.constant 0 : i32
    %2 = arith.cmpi ne, %1, %c0_i32_0 : i32
    scf.if %2 {
      %cst_19 = arith.constant 0.000000e+00 : f32
      %c0_20 = arith.constant 0 : index
      %51 = memref.load %arg7[%c0_20] : memref<1xf32, #tpu.memory_space<smem>>
      memref.store %cst_19, %arg7[%c0_20] : memref<1xf32, #tpu.memory_space<smem>>
    } else {
    }
    %c0 = arith.constant 0 : index
    %c0_1 = arith.constant 0 : index
    %3 = vector.load %arg4[%c0, %c0_1] : memref<128x128xf32, #tpu.memory_space<vmem>>, vector<128x128xf32>
    %c0_2 = arith.constant 0 : index
    %c0_3 = arith.constant 0 : index
    %4 = vector.load %arg3[%c0_2, %c0_3] : memref<8x128xf32, #tpu.memory_space<vmem>>, vector<8x128xf32>
    %c0_4 = arith.constant 0 : index
    %c0_5 = arith.constant 0 : index
    %5 = vector.load %arg5[%c0_4, %c0_5] : memref<1x128xf32, #tpu.memory_space<vmem>>, vector<1x128xf32>
    %cst = arith.constant dense<0.000000e+00> : vector<8x128xf32>
    %6 = tpu.matmul %4, %3, %cst {dimension_numbers = #tpu.dot_dimension_numbers<[1], [1], [0], [0], [0, 0, 1, 0], [], []>} : vector<8x128xf32>, vector<128x128xf32>, vector<8x128xf32> -> vector<8x128xf32>
    %7 = vector.extract_strided_slice %6 {offsets = [0, 0], sizes = [1, 128], strides = [1, 1]} : vector<8x128xf32> to vector<1x128xf32>
    %c0_6 = arith.constant 0 : index
    %8 = memref.load %arg2[%c0_6] : memref<1xf32, #tpu.memory_space<smem>>
    %9 = vector.broadcast %8 : f32 to vector<1x128xf32>
    %10 = arith.addf %7, %9 : vector<1x128xf32>
    %cst_7 = arith.constant 0.000000e+00 : f32
    %11 = vector.broadcast %cst_7 : f32 to vector<1x128xf32>
    %12 = arith.maximumf %10, %11 : vector<1x128xf32>
    %13 = math.absf %10 : vector<1x128xf32>
    %cst_8 = arith.constant 0.000000e+00 : f32
    %14 = vector.broadcast %cst_8 : f32 to vector<1x128xf32>
    %15 = arith.subf %14, %13 : vector<1x128xf32>
    %16 = math.exp %15 : vector<1x128xf32>
    %cst_9 = arith.constant 1.000000e+00 : f32
    %17 = vector.broadcast %cst_9 : f32 to vector<1x128xf32>
    %18 = arith.addf %17, %16 : vector<1x128xf32>
    %19 = math.log %18 : vector<1x128xf32>
    %20 = arith.addf %12, %19 : vector<1x128xf32>
    %21 = arith.subf %20, %10 : vector<1x128xf32>
    %cst_10 = arith.constant 1.000000e+02 : f32
    %22 = vector.broadcast %cst_10 : f32 to vector<1x128xf32>
    %23 = arith.minimumf %21, %22 : vector<1x128xf32>
    %cst_11 = arith.constant 1.000000e+02 : f32
    %24 = vector.broadcast %cst_11 : f32 to vector<1x128xf32>
    %25 = arith.minimumf %20, %24 : vector<1x128xf32>
    %26 = arith.mulf %5, %23 : vector<1x128xf32>
    %cst_12 = arith.constant 1.000000e+00 : f32
    %27 = vector.broadcast %cst_12 : f32 to vector<1x128xf32>
    %28 = arith.subf %27, %5 : vector<1x128xf32>
    %29 = arith.mulf %28, %25 : vector<1x128xf32>
    %30 = arith.addf %26, %29 : vector<1x128xf32>
    %c1_i32 = arith.constant 1 : i32
    %31 = arith.muli %arg0, %c1_i32 : i32
    %32 = arith.addi %31, %arg1 : i32
    %c128_i32 = arith.constant 128 : i32
    %33 = arith.muli %32, %c128_i32 : i32
    %34 = tpu.iota {dimensions = array<i32: 1>} : vector<1x128xi32>
    %35 = vector.broadcast %33 : i32 to vector<1x128xi32>
    %36 = arith.addi %35, %34 : vector<1x128xi32>
    %c8_i32 = arith.constant 8 : i32
    %37 = vector.broadcast %c8_i32 : i32 to vector<1x128xi32>
    %38 = arith.cmpi slt, %36, %37 : vector<1x128xi32>
    %cst_13 = arith.constant 0.000000e+00 : f32
    %39 = vector.broadcast %cst_13 : f32 to vector<1x128xf32>
    %40 = arith.select %38, %30, %39 : vector<1x128xi1>, vector<1x128xf32>
    %c0_14 = arith.constant 0 : index
    %41 = memref.load %arg7[%c0_14] : memref<1xf32, #tpu.memory_space<smem>>
    %42 = vector.shape_cast %40 : vector<1x128xf32> to vector<1x1x128xf32>
    %cst_15 = arith.constant dense<0.000000e+00> : vector<1xf32>
    %43 = vector.multi_reduction <add>, %42, %cst_15 [1, 2] : vector<1x1x128xf32> to vector<1xf32>
    %44 = vector.shape_cast %43 : vector<1xf32> to vector<1x1x1xf32>
    %45 = vector.extract %44[0, 0, 0] : f32 from vector<1x1x1xf32>
    %46 = arith.addf %41, %45 : f32
    %c0_16 = arith.constant 0 : index
    %47 = memref.load %arg7[%c0_16] : memref<1xf32, #tpu.memory_space<smem>>
    memref.store %46, %arg7[%c0_16] : memref<1xf32, #tpu.memory_space<smem>>
    %c0_i32_17 = arith.constant 0 : i32
    %48 = arith.cmpi eq, %arg1, %c0_i32_17 : i32
    %49 = arith.extui %48 : i1 to i32
    %c0_i32_18 = arith.constant 0 : i32
    %50 = arith.cmpi ne, %49, %c0_i32_18 : i32
    scf.if %50 {
      %c0_19 = arith.constant 0 : index
      %51 = memref.load %arg7[%c0_19] : memref<1xf32, #tpu.memory_space<smem>>
      %cst_20 = arith.constant 0.000000e+00 : f32
      %52 = vector.broadcast %cst_20 : f32 to vector<1x8x128xf32>
      %53 = vector.broadcast %51 : f32 to vector<1x8x128xf32>
      %54 = arith.addf %53, %52 : vector<1x8x128xf32>
      %c0_21 = arith.constant 0 : index
      %c0_22 = arith.constant 0 : index
      %c0_23 = arith.constant 0 : index
      %55 = vector.load %arg6[%c0_21, %c0_22, %c0_23] : memref<1x8x128xf32, #tpu.memory_space<vmem>>, vector<1x8x128xf32>
      tpu.vector_store %arg6[%c0_21, %c0_22, %c0_23], %54 {strides = array<i32>} : memref<1x8x128xf32, #tpu.memory_space<vmem>>, vector<1x8x128xf32>,
    } else {
    }
    return
  }
  func.func @transform_0(%arg0: i32, %arg1: i32) -> i32 {
    %c0_i32 = arith.constant 0 : i32
    %c0_i32_0 = arith.constant 0 : i32
    return %c0_i32 : i32
  }
  func.func @transform_1(%arg0: i32, %arg1: i32) -> (i32, i32) {
    %c0_i32 = arith.constant 0 : i32
    %c0_i32_0 = arith.constant 0 : i32
    %c0_i32_1 = arith.constant 0 : i32
    return %c0_i32, %c0_i32_0 : i32, i32
  }
  func.func @transform_2(%arg0: i32, %arg1: i32) -> (i32, i32) {
    %c1_i32 = arith.constant 1 : i32
    %0 = arith.muli %arg0, %c1_i32 : i32
    %1 = arith.addi %0, %arg1 : i32
    %c0_i32 = arith.constant 0 : i32
    %c0_i32_0 = arith.constant 0 : i32
    return %1, %c0_i32 : i32, i32
  }
  func.func @transform_3(%arg0: i32, %arg1: i32) -> (i32, i32) {
    %c1_i32 = arith.constant 1 : i32
    %0 = arith.muli %arg0, %c1_i32 : i32
    %1 = arith.addi %0, %arg1 : i32
    %c0_i32 = arith.constant 0 : i32
    %c0_i32_0 = arith.constant 0 : i32
    return %c0_i32, %1 : i32, i32
  }
  func.func @transform_4(%arg0: i32, %arg1: i32) -> (i32, i32, i32) {
    %c0_i32 = arith.constant 0 : i32
    %c0_i32_0 = arith.constant 0 : i32
    %c0_i32_1 = arith.constant 0 : i32
    return %arg0, %c0_i32, %c0_i32_0 : i32, i32, i32
  }
}

</mosaic_0001>

<llo_original>
// kernel: tpu_custom_call.1
$region0: #{tpu_custom_call.1}
  #allocation0 [shape = 'u32[]', space=smem, size = 0x4, offset = 0x4, fixed_abs, tag = 'smem constant byte address 0x4 - core index']
  #allocation1 [shape = 'u32[144,128]{1,0:T(1,128)}', space=vmem, size = 0x12000, scoped, tag = 'internal scratch']
  #allocation2 [shape = 'f32[1]{0:T(128)}', space=smem, size = 0x200, scoped, tag = 'scratch operand']
  #allocation3 [shape = 'f32[1]{0:T(128)S(6)}', space=smem, size = 0x200, scoped, tag = 'scoped memory for tpu_custom_call.1']
  %s0 = inlined_call_operand.<no memory space> [shape: f32[1], index: 0, kind: input, shape index: {}]
  %s1 = inlined_call_operand.hbm [shape: f32[8,128], index: 1, kind: input, shape index: {}]
  %s2 = inlined_call_operand.hbm [shape: f32[256,128], index: 2, kind: input, shape index: {}]
  %s3 = inlined_call_operand.vmem [shape: f32[1,256], index: 3, kind: input, shape index: {}]
  %s4 = inlined_call_operand.hbm [shape: f32[2,8,128], index: 4, kind: output, shape index: {}]
  %s5 = sld [smem:[#allocation0]]
  $region65: #{tpu_custom_call.1} parent=0
    _
  %s7 = ssub.s32 1, %s5
  %s8 = scalar_select 0, %s7, %s5
  %9 = sst [smem:[#allocation3]] %s0
  $region1: #{tpu_custom_call.1} parent=0
    #allocation4 [shape = 'u8[4096]{0}', space=vmem, size = 0x1000, scoped, tag = 'input window, operand 1, single buffered']
    #allocation5 [shape = 's32[2]{0}', space=sflag, size = 0x8, scoped, tag = 'scoped memory for tpu_custom_call.1']
    #allocation6 [shape = 's32[2]{0}', space=sflag, size = 0x8, scoped, tag = 'scoped memory for tpu_custom_call.1']
    #allocation7 [shape = 'u8[131072]{0}', space=vmem, size = 0x20000, scoped, tag = 'input window, operand 2']
    #allocation8 [shape = 's32[2]{0}', space=sflag, size = 0x8, scoped, tag = 'scoped memory for tpu_custom_call.1']
    #allocation9 [shape = 'u8[8192]{0}', space=vmem, size = 0x2000, scoped, tag = 'output window, operand 0']
    %10 = vsyncpa [#allocation5], 0
    %11 = vsyncpa [#allocation8], 0
    %s12 = scalar_lea.sflag [#allocation8], 1
    %13 = vsyncpa %s12, 0
    %14 = vsyncpa [#allocation6], 0
    %s15 = scalar_lea.sflag [#allocation6], 1
    %16 = vsyncpa %s15, 0
    loop: start=0, step=1, limit=4
    $region2: #{tpu_custom_call.1} parent=1 // loop_pre_header
      _
    $region3: #{tpu_custom_call.1} parent=1 // loop_header
      %s18 = sphi 0, %s22
      %p19 = scmp.ge.s32.totalorder %s18, 4
      %s25 = sphi 0, %s37
      %s26 = sphi 0, %s33
      %s27 = sphi 0, %s25
      %s28 = sphi 0, %s26
      %s29 = sphi 0, %s27
      %s30 = sphi 0, %s28
      %s38 = sphi 0, %s38
      %s40 = sphi 0, %s38
      %s41 = sphi 0, %s40
      %s55 = sphi 0, %s41
      %s59 = sphi 0, %s59
      %s61 = sphi 0, %s59
      %s62 = sphi 0, %s61
      %s76 = sphi 0, %s62
      %s84 = sphi 0, %s86
      %s87 = sphi 0, %s84
      %s88 = sphi 0, %s87
      %s104 = sphi 0, %s88
      %s112 = sphi 0, %s114
      %s115 = sphi 0, %s112
      %s116 = sphi 0, %s115
      %s132 = sphi 0, %s116
      %s138 = sphi 0, %s140
      %s141 = sphi 0, %s138
      %s142 = sphi 0, %s141
      %s158 = sphi 0, %s142
    $region4: #{tpu_custom_call.1} parent=1 // loop_header_branch
      %21 = sbr.rel (%p19) target = $region8
    $region5: #{tpu_custom_call.1} parent=1 // loop_body
      %s23 = ssub.s32 %s18, 1
      %s24 = ssub.s32 %s18, 2
      %s31 = sadd.s32 1, %s26
      %p32 = scmp.ge.s32.totalorder %s31, 1
      %s33 = scalar_select %p32, 0, %s31
      %s34 = sadd.s32 1, %s25
      %s35 = scalar_select %p32, %s34, %s25
      %p36 = scmp.ge.s32.totalorder %s35, 2
      %s37 = scalar_select %p36, 0, %s35
      %s39 = sadd.s32 %s38, 1
      %p42 = scmp.eq.s32.totalorder %s18, 1
      %p43 = scmp.ne.s32.totalorder %s38, %s40
      %p44 = scmp.eq.s32.totalorder %s18, 0
      %p45 = por %p43, %p44
      %p46 = scmp.ne.s32.totalorder %s38, %s40
      %p47 = scmp.eq.s32.totalorder %s23, 1
      %p48 = por %p46, %p47
      %p49 = scmp.ne.s32.totalorder %s40, %s41
      %p50 = scmp.eq.s32.totalorder %s23, 0
      %p51 = por %p49, %p50
      %p52 = scmp.ne.s32.totalorder %s40, %s41
      %p53 = scmp.eq.s32.totalorder %s24, 1
      %p54 = por %p52, %p53
      %p56 = scmp.ne.s32.totalorder %s41, %s55
      %p57 = scmp.eq.s32.totalorder %s24, 0
      %p58 = por %p56, %p57
      %s60 = sadd.s32 %s59, 1
      %p63 = scmp.eq.s32.totalorder %s18, 1
      %p64 = scmp.ne.s32.totalorder %s59, %s61
      %p65 = scmp.eq.s32.totalorder %s18, 0
      %p66 = por %p64, %p65
      %p67 = scmp.ne.s32.totalorder %s59, %s61
      %p68 = scmp.eq.s32.totalorder %s23, 1
      %p69 = por %p67, %p68
      %p70 = scmp.ne.s32.totalorder %s61, %s62
      %p71 = scmp.eq.s32.totalorder %s23, 0
      %p72 = por %p70, %p71
      %p73 = scmp.ne.s32.totalorder %s61, %s62
      %p74 = scmp.eq.s32.totalorder %s24, 1
      %p75 = por %p73, %p74
      %p77 = scmp.ne.s32.totalorder %s62, %s76
      %p78 = scmp.eq.s32.totalorder %s24, 0
      %p79 = por %p77, %p78
      %s80 = sadd.s32 %s25, %s26
      %s81 = sadd.s32 %s37, %s33
      %s82 = ssub.s32 %s80, %s81
      %p83 = scmp.eq.s32.totalorder %s82, 0
      %s85 = sadd.s32 %s84, 1
      %s86 = scalar_select %p83, %s84, %s85
      %p89 = pneg %p83
      %p90 = scmp.eq.s32.totalorder %s18, 1
      %p91 = por %p89, %p90
      %p92 = scmp.ne.s32.totalorder %s84, %s87
      %p93 = scmp.eq.s32.totalorder %s18, 0
      %p94 = por %p92, %p93
      %p95 = scmp.ne.s32.totalorder %s84, %s87
      %p96 = scmp.eq.s32.totalorder %s23, 1
      %p97 = por %p95, %p96
      %p98 = scmp.ne.s32.totalorder %s87, %s88
      %p99 = scmp.eq.s32.totalorder %s23, 0
      %p100 = por %p98, %p99
      %p101 = scmp.ne.s32.totalorder %s87, %s88
      %p102 = scmp.eq.s32.totalorder %s24, 1
      %p103 = por %p101, %p102
      %p105 = scmp.ne.s32.totalorder %s88, %s104
      %p106 = scmp.eq.s32.totalorder %s24, 0
      %p107 = por %p105, %p106
      %s108 = sadd.s32 %s25, %s26
      %s109 = sadd.s32 %s37, %s33
      %s110 = ssub.s32 %s108, %s109
      %p111 = scmp.eq.s32.totalorder %s110, 0
      %s113 = sadd.s32 %s112, 1
      %s114 = scalar_select %p111, %s112, %s113
      %p117 = pneg %p111
      %p118 = scmp.eq.s32.totalorder %s18, 1
      %p119 = por %p117, %p118
      %p120 = scmp.ne.s32.totalorder %s112, %s115
      %p121 = scmp.eq.s32.totalorder %s18, 0
      %p122 = por %p120, %p121
      %p123 = scmp.ne.s32.totalorder %s112, %s115
      %p124 = scmp.eq.s32.totalorder %s23, 1
      %p125 = por %p123, %p124
      %p126 = scmp.ne.s32.totalorder %s115, %s116
      %p127 = scmp.eq.s32.totalorder %s23, 0
      %p128 = por %p126, %p127
      %p129 = scmp.ne.s32.totalorder %s115, %s116
      %p130 = scmp.eq.s32.totalorder %s24, 1
      %p131 = por %p129, %p130
      %p133 = scmp.ne.s32.totalorder %s116, %s132
      %p134 = scmp.eq.s32.totalorder %s24, 0
      %p135 = por %p133, %p134
      %s136 = ssub.s32 %s25, %s37
      %p137 = scmp.eq.s32.totalorder %s136, 0
      %s139 = sadd.s32 %s138, 1
      %s140 = scalar_select %p137, %s138, %s139
      %p143 = pneg %p137
      %p144 = scmp.eq.s32.totalorder %s18, 1
      %p145 = por %p143, %p144
      %p146 = scmp.ne.s32.totalorder %s138, %s141
      %p147 = scmp.eq.s32.totalorder %s18, 0
      %p148 = por %p146, %p147
      %p149 = scmp.ne.s32.totalorder %s138, %s141
      %p150 = scmp.eq.s32.totalorder %s23, 1
      %p151 = por %p149, %p150
      %p152 = scmp.ne.s32.totalorder %s141, %s142
      %p153 = scmp.eq.s32.totalorder %s23, 0
      %p154 = por %p152, %p153
      %p155 = scmp.ne.s32.totalorder %s141, %s142
      %p156 = scmp.eq.s32.totalorder %s24, 1
      %p157 = por %p155, %p156
      %p159 = scmp.ne.s32.totalorder %s142, %s158
      %p160 = scmp.eq.s32.totalorder %s24, 0
      %p161 = por %p159, %p160
      %p162 = scmp.le.s32.totalorder 1, %s18
      %p163 = scmp.lt.s32.totalorder %s18, 3
      %p164 = pnand %p162, %p163
      %p165 = pneg %p164
      // Predicated region
      $region9: #{tpu_custom_call.1} parent=5 // pred_check
        _
      $region10: #{tpu_custom_call.1} parent=5 // pred_check_branch
        %167 = sbr.rel (%p164) target = $region12
      $region11: #{tpu_custom_call.1} parent=5 // pred_region
        %s168 = ssub.s32 %s18, 1
        // Predicated region
        $region13: #{tpu_custom_call.1} parent=11 // pred_check
          %p169 = pneg %p51
        $region14: #{tpu_custom_call.1} parent=11 // pred_check_branch
          %171 = sbr.rel (%p169) target = $region16
        $region15: #{tpu_custom_call.1} parent=11 // pred_region
          _
        $region16: #{tpu_custom_call.1} parent=11 // pred_fallthru
          _
        // Predicated region
        $region17: #{tpu_custom_call.1} parent=11 // pred_check
          %p172 = pneg %p72
        $region18: #{tpu_custom_call.1} parent=11 // pred_check_branch
          %174 = sbr.rel (%p172) target = $region20
        $region19: #{tpu_custom_call.1} parent=11 // pred_region
          %s176 = ssub.s32 128, 128
          %177 = vsyncadd [#allocation5], %s176
          %s179 = sshll.u32 [#allocation4], 4
          %s180 = int_to_ptr.vmem [resolvable:$true] %s179
          %182 = dma.hbm_to_vmem [thread:$0]  %s1, 128, %s180, [#allocation5]
        $region20: #{tpu_custom_call.1} parent=11 // pred_fallthru
          _
      $region12: #{tpu_custom_call.1} parent=5 // pred_fallthru
        _
      %p183 = scmp.lt.s32.totalorder %s18, 2
      // Predicated region
      $region21: #{tpu_custom_call.1} parent=5 // pred_check
        %p184 = pneg %p183
      $region22: #{tpu_custom_call.1} parent=5 // pred_check_branch
        %186 = sbr.rel (%p184) target = $region24
      $region23: #{tpu_custom_call.1} parent=5 // pred_region
        // Predicated region
        $region25: #{tpu_custom_call.1} parent=23 // pred_check
          %p187 = pneg %p94
        $region26: #{tpu_custom_call.1} parent=23 // pred_check_branch
          %189 = sbr.rel (%p187) target = $region28
        $region27: #{tpu_custom_call.1} parent=23 // pred_region
          %s190 = sand.u32 %s84, 1
          %s191 = scalar_lea.sflag [#allocation8], %s190
          %s192 = sand.u32 %s84, 1
          %s193 = smul.addr %s192, 128
          %s194 = scalar_lea.vmem [#allocation7], %s193
          %s195 = sadd.s32 %s25, %s26
          %s196 = smul.u32 16, %s195
          %s198 = ssub.s32 2048, 2048
          %199 = vsyncadd %s191, %s198
          %s200 = smul.addr %s196, 128
          %s201 = scalar_lea.hbm %s2, %s200
          %s202 = sshll.u32 %s194, 4
          %s203 = int_to_ptr.vmem [resolvable:$true] %s202
          %208 = dma.hbm_to_vmem [thread:$0]  %s201, 2048, %s203, %s191, 128, 128, 8
        $region28: #{tpu_custom_call.1} parent=23 // pred_fallthru
          _
        // Predicated region
        $region29: #{tpu_custom_call.1} parent=23 // pred_check
          %p209 = pneg %p122
        $region30: #{tpu_custom_call.1} parent=23 // pred_check_branch
          %211 = sbr.rel (%p209) target = $region32
        $region31: #{tpu_custom_call.1} parent=23 // pred_region
          %s212 = sadd.s32 %s25, %s26
          %p213 = scmp.lt.s32.totalorder %s212, 1
          %s214 = scalar_select %p213, %s212, 1
          %s215 = scalar_lea.vmem %s3, %s214
          %s216 = sadd.s32 %s25, %s26
        $region32: #{tpu_custom_call.1} parent=23 // pred_fallthru
          _
      $region24: #{tpu_custom_call.1} parent=5 // pred_fallthru
        _
      %p217 = scmp.le.s32.totalorder 1, %s18
      %p218 = scmp.lt.s32.totalorder %s18, 3
      %p219 = pnand %p217, %p218
      %p220 = pneg %p219
      // Predicated region
      $region33: #{tpu_custom_call.1} parent=5 // pred_check
        _
      $region34: #{tpu_custom_call.1} parent=5 // pred_check_branch
        %222 = sbr.rel (%p219) target = $region36
      $region35: #{tpu_custom_call.1} parent=5 // pred_region
        %s223 = ssub.s32 %s18, 1
        // Predicated region
        $region37: #{tpu_custom_call.1} parent=35 // pred_check
          %p224 = pneg %p72
        $region38: #{tpu_custom_call.1} parent=35 // pred_check_branch
          %226 = sbr.rel (%p224) target = $region40
        $region39: #{tpu_custom_call.1} parent=35 // pred_region
          %227 = dma.done [#allocation5], 128
        $region40: #{tpu_custom_call.1} parent=35 // pred_fallthru
          _
        %s228 = sand.u32 %s87, 1
        %s229 = scalar_lea.sflag [#allocation8], %s228
        %s230 = sand.u32 %s87, 1
        %s231 = smul.addr %s230, 128
        %s232 = scalar_lea.vmem [#allocation7], %s231
        // Predicated region
        $region41: #{tpu_custom_call.1} parent=35 // pred_check
          %p233 = pneg %p100
        $region42: #{tpu_custom_call.1} parent=35 // pred_check_branch
          %235 = sbr.rel (%p233) target = $region44
        $region43: #{tpu_custom_call.1} parent=35 // pred_region
          %236 = dma.done %s229, 2048
        $region44: #{tpu_custom_call.1} parent=35 // pred_fallthru
          _
        %p237 = pneg %p51
        %p238 = pneg %p48
        %p239 = pneg %p72
        %p240 = pneg %p69
        %s241 = sand.u32 %s87, 1
        %s242 = scalar_lea.sflag [#allocation8], %s241
        %s243 = sand.u32 %s87, 1
        %s244 = smul.addr %s243, 128
        %s245 = scalar_lea.vmem [#allocation7], %s244
        %p246 = pneg %p100
        %p247 = pneg %p97
        %s248 = sadd.s32 %s27, %s28
        %p249 = scmp.lt.s32.totalorder %s248, 1
        %s250 = scalar_select %p249, %s248, 1
        %s251 = scalar_lea.vmem %s3, %s250
        %p252 = pneg %p128
        %p253 = pneg %p125
        %p254 = pneg %p154
        %p255 = pneg %p151
        %s256 = sand.u32 %s141, 1
        %s257 = scalar_lea.sflag [#allocation6], %s256
        %s258 = sand.u32 %s141, 1
        %s259 = smul.addr %s258, 8
        %s260 = scalar_lea.vmem [#allocation9], %s259
        %s261 = sadd.s32 %s27, %s28
        %s262 = smul.u32 16, %s261
        %s263 = sadd.s32 %s27, %s28
        %p264 = scmp.lt.s32.totalorder %s263, 1
        %s265 = scalar_select %p264, %s263, 1
        %s266 = scalar_lea.vmem %s3, %s265
        %s267 = sadd.s32 %s27, %s28
        %p268 = scmp.eq.s32.totalorder %s28, 0
        // Predicated region
        $region45: #{tpu_custom_call.1} parent=35 // pred_check
          %p269 = pneg %p268
        $region46: #{tpu_custom_call.1} parent=35 // pred_check_branch
          %271 = sbr.rel (%p269) target = $region48
        $region47: #{tpu_custom_call.1} parent=35 // pred_region
          %s272 = scalar_lea.smem [#allocation2], 0
          %273 = sst [smem:[%s272]] 0.0
        $region48: #{tpu_custom_call.1} parent=35 // pred_fallthru
          _
        %v274 = vld [vmem:[%s232] sm:$0xff]
        %v275 = vld [vmem:[%s232 + $0x8] sm:$0xff]
        %v276 = vld [vmem:[%s232 + $0x10] sm:$0xff]
        %v277 = vld [vmem:[%s232 + $0x18] sm:$0xff]
        %v278 = vld [vmem:[%s232 + $0x20] sm:$0xff]
        %v279 = vld [vmem:[%s232 + $0x28] sm:$0xff]
        %v280 = vld [vmem:[%s232 + $0x30] sm:$0xff]
        %v281 = vld [vmem:[%s232 + $0x38] sm:$0xff]
        %v282 = vld [vmem:[%s232 + $0x40] sm:$0xff]
        %v283 = vld [vmem:[%s232 + $0x48] sm:$0xff]
        %v284 = vld [vmem:[%s232 + $0x50] sm:$0xff]
        %v285 = vld [vmem:[%s232 + $0x58] sm:$0xff]
        %v286 = vld [vmem:[%s232 + $0x60] sm:$0xff]
        %v287 = vld [vmem:[%s232 + $0x68] sm:$0xff]
        %v288 = vld [vmem:[%s232 + $0x70] sm:$0xff]
        %v289 = vld [vmem:[%s232 + $0x78] sm:$0xff]
        %v290 = vld [vmem:[#allocation4] sm:$0xff]
        %v291 = vld [vmem:[%s266] sm:$0x1]
        %292 = vmatprep.subr.mxu0 0.0
        %293 = vmatpush1.xpose.msra.mxu0 %v274
        %294 = vmatprep.subr.mxu0 0.0
        %295 = vmatpush1.xpose.msra.mxu0 %v275
        %296 = vmatprep.subr.mxu0 0.0
        %297 = vmatpush1.xpose.msra.mxu0 %v276
        %298 = vmatprep.subr.mxu0 0.0
        %299 = vmatpush1.xpose.msra.mxu0 %v277
        %300 = vmatprep.subr.mxu0 0.0
        %301 = vmatpush1.xpose.msra.mxu0 %v278
        %302 = vmatprep.subr.mxu0 0.0
        %303 = vmatpush1.xpose.msra.mxu0 %v279
        %304 = vmatprep.subr.mxu0 0.0
        %305 = vmatpush1.xpose.msra.mxu0 %v280
        %306 = vmatprep.subr.mxu0 0.0
        %307 = vmatpush1.xpose.msra.mxu0 %v281
        %308 = vmatprep.subr.mxu0 0.0
        %309 = vmatpush1.xpose.msra.mxu0 %v282
        %310 = vmatprep.subr.mxu0 0.0
        %311 = vmatpush1.xpose.msra.mxu0 %v283
        %312 = vmatprep.subr.mxu0 0.0
        %313 = vmatpush1.xpose.msra.mxu0 %v284
        %314 = vmatprep.subr.mxu0 0.0
        %315 = vmatpush1.xpose.msra.mxu0 %v285
        %316 = vmatprep.subr.mxu0 0.0
        %317 = vmatpush1.xpose.msra.mxu0 %v286
        %318 = vmatprep.subr.mxu0 0.0
        %319 = vmatpush1.xpose.msra.mxu0 %v287
        %320 = vmatprep.subr.mxu0 0.0
        %321 = vmatpush1.xpose.msra.mxu0 %v288
        %322 = vmatprep.subr.mxu0 0.0
        %323 = vmatpush1.xpose.msra.mxu0 %v289
        %324 = vmatprep.subr.mxu0 0.0
        %325 = vmatpush1.xpose.msra.mxu0 0.0
        %326 = vmatprep.subr.mxu0 0.0
        %327 = vmatpush1.xpose.msra.mxu0 0.0
        %328 = vmatprep.subr.mxu0 0.0
        %329 = vmatpush1.xpose.msra.mxu0 0.0
        %330 = vmatprep.subr.mxu0 0.0
        %331 = vmatpush1.xpose.msra.mxu0 0.0
        %332 = vmatprep.subr.mxu0 0.0
        %333 = vmatpush1.xpose.msra.mxu0 0.0
        %334 = vmatprep.subr.mxu0 0.0
        %335 = vmatpush1.xpose.msra.mxu0 0.0
        %336 = vmatprep.subr.mxu0 0.0
        %337 = vmatpush1.xpose.msra.mxu0 0.0
        %338 = vmatprep.subr.mxu0 0.0
        %339 = vmatpush1.xpose.msra.mxu0 0.0
        %340 = vmatprep.subr.mxu0 0.0
        %341 = vmatpush1.xpose.msra.mxu0 0.0
        %342 = vmatprep.subr.mxu0 0.0
        %343 = vmatpush1.xpose.msra.mxu0 0.0
        %344 = vmatprep.subr.mxu0 0.0
        %345 = vmatpush1.xpose.msra.mxu0 0.0
        %346 = vmatprep.subr.mxu0 0.0
        %347 = vmatpush1.xpose.msra.mxu0 0.0
        %348 = vmatprep.subr.mxu0 0.0
        %349 = vmatpush1.xpose.msra.mxu0 0.0
        %350 = vmatprep.subr.mxu0 0.0
        %351 = vmatpush1.xpose.msra.mxu0 0.0
        %352 = vmatprep.subr.mxu0 0.0
        %353 = vmatpush1.xpose.msra.mxu0 0.0
        %354 = vmatprep.subr.mxu0 0.0
        %355 = vmatpush1.xpose.msra.mxu0 0.0
        %356 = vmatprep.mubr.f32.mxu0 0.0
        %357 = vmatmul.mubr.f32.gmra.mrb[0].mxu0 %v290
        %v358 = vpop.f32.mrb[0].mxu0
        %v359 = vadd.f32 0.0, %v358
        %v360 = vpop.f32.mrb[0].mxu0
        %361 = vdwg.mxu0
        %s362 = sld [smem:[#allocation3]]
        %v363 = vstv %s362
        %v364 = vadd.f32 %v359, %v363
        %v365 = vmax.f32 %v364, 0.0
        %v366 = vand.u32 2147483647, %v364
        %v367 = vsub.f32 0.0, %v366
        %v368 = vmul.f32 %v367, 1.442695
        %v369 = vpow.pop %v368
        %v370 = vadd.f32 %v369, 1.0
        %v371 = vlog2.pop %v370
        %v372 = vmul.f32 %v371, 0.6931472
        %v373 = vadd.f32 %v365, %v372
        %v374 = vsub.f32 %v373, %v364
        %v375 = vmin.f32 %v374, 100.0
        %v376 = vmin.f32 %v373, 100.0
        %v377 = vmul.f32 %v291, %v375
        %v378 = vsub.f32 1.0, %v291
        %v379 = vmul.f32 %v378, %v376
        %v380 = vadd.f32 %v377, %v379
        %s381 = sadd.s32 %s27, %s28
        %s382 = smul.u32 %s381, 128
        %v383 = vlaneseq
        %v384 = vand.u32 %v383, 127
        %v385 = vstv %s382
        %v386 = vadd.s32 %v385, %v384
        %vm387 = vcmp.lt.s32.totalorder %v386, 8
        %v388 = vsel %vm387, %v380, 0.0
        %s389 = sld [smem:[#allocation2]]
        %vm390 = vcmask 1040384
        %v391 = vsel %vm390, %v388, 0.0
        %392 = vadd.xlane.f32.xlu0 %v391
        %v393 = vpop.xlane.xlu0 %392
        %v394 = vrot.slane %v393, 4
        %v395 = vadd.f32 %v393, %v394
        %v396 = vrot.slane %v395, 2
        %v397 = vadd.f32 %v395, %v396
        %v398 = vrot.slane %v397, 1
        %v399 = vadd.f32 %v397, %v398
        %s400 = vtos %v399
        %s401 = sadd.f32 %s389, %s400
        %s402 = scalar_lea.smem [#allocation2], 0
        %403 = sst [smem:[%s402]] %s401
        // Predicated region
        $region49: #{tpu_custom_call.1} parent=35 // pred_check
          %p404 = pneg %p268
        $region50: #{tpu_custom_call.1} parent=35 // pred_check_branch
          %406 = sbr.rel (%p404) target = $region52
        $region51: #{tpu_custom_call.1} parent=35 // pred_region
          %s407 = sld [smem:[#allocation2]]
          %v408 = vstv %s407
          %v409 = vadd.f32 %v408, 0.0
          %410 = vst [vmem:[%s260] sm:$0xff] %v409
        $region52: #{tpu_custom_call.1} parent=35 // pred_fallthru
          _
        %s411 = sand.u32 %s141, 1
        %s412 = scalar_lea.sflag [#allocation6], %s411
        %s413 = sand.u32 %s141, 1
        %s414 = smul.addr %s413, 8
        %s415 = scalar_lea.vmem [#allocation9], %s414
        // Predicated region
        $region53: #{tpu_custom_call.1} parent=35 // pred_check
          %p416 = pneg %p151
        $region54: #{tpu_custom_call.1} parent=35 // pred_check_branch
          %418 = sbr.rel (%p416) target = $region56
        $region55: #{tpu_custom_call.1} parent=35 // pred_region
          %s420 = ssub.s32 128, 128
          %421 = vsyncadd %s412, %s420
          %s422 = smul.addr %s27, 128
          %s423 = scalar_lea.hbm %s4, %s422
          %s425 = sshll.u32 %s415, 4
          %s426 = int_to_ptr.vmem [resolvable:$true] %s425
          %428 = dma.vmem_to_hbm [thread:$0]  %s426, 128, %s423, %s412
        $region56: #{tpu_custom_call.1} parent=35 // pred_fallthru
          _
      $region36: #{tpu_custom_call.1} parent=5 // pred_fallthru
        _
      %p429 = scmp.le.s32.totalorder 2, %s18
      // Predicated region
      $region57: #{tpu_custom_call.1} parent=5 // pred_check
        %p430 = pneg %p429
      $region58: #{tpu_custom_call.1} parent=5 // pred_check_branch
        %432 = sbr.rel (%p430) target = $region60
      $region59: #{tpu_custom_call.1} parent=5 // pred_region
        %s433 = ssub.s32 %s18, 2
        // Predicated region
        $region61: #{tpu_custom_call.1} parent=59 // pred_check
          %p434 = pneg %p157
        $region62: #{tpu_custom_call.1} parent=59 // pred_check_branch
          %436 = sbr.rel (%p434) target = $region64
        $region63: #{tpu_custom_call.1} parent=59 // pred_region
          %s437 = sand.u32 %s142, 1
          %s438 = scalar_lea.sflag [#allocation6], %s437
          %s439 = sand.u32 %s142, 1
          %s440 = smul.addr %s439, 8
          %s441 = scalar_lea.vmem [#allocation9], %s440
          %442 = dma.done %s438, 128
        $region64: #{tpu_custom_call.1} parent=59 // pred_fallthru
          _
      $region60: #{tpu_custom_call.1} parent=5 // pred_fallthru
        _
    $region6: #{tpu_custom_call.1} parent=1 // loop_footer
      %s22 = sadd.s32 1, %s18
    $region7: #{tpu_custom_call.1} parent=1 // loop_footer_branch
      %17 = sbr.rel target = $region3
    $region8: #{tpu_custom_call.1} parent=1 // loop_exit
      _
    %443 = vsyncpa [#allocation5], 1
    %s444 = scalar_lea.sflag [#allocation5], 1
    %445 = vsyncpa %s444, 1
    %446 = vsyncpa [#allocation8], 1
    %s447 = scalar_lea.sflag [#allocation8], 1
    %448 = vsyncpa %s447, 1
    %449 = vsyncpa [#allocation6], 1
    %s450 = scalar_lea.sflag [#allocation6], 1
    %451 = vsyncpa %s450, 1

</llo_original>
